<compile_context>
chip_gen: v5e
topology: v5e:2x2
jax: 0.10.0
libtpu: 0.0.40
codegen_flags: <defaults>
</compile_context>

<pallas_src>
import functools

import jax
import jax.numpy as jnp
from jax.experimental import pallas as pl
from jax.experimental.pallas import tpu as pltpu


def critic_kernel(x_ref, slab_ref, out_ref, *, in_dim):
    """Fused 3-layer MLP.

    slab_ref (f32, shape (H + in_dim + 4, H)):
        rows [0 : H]                 -> w2  (H, H)   (8-sublane aligned tile)
        rows [H : H + in_dim]        -> w1  (in_dim, H)
        row  H + in_dim              -> w3 stored as a row (1, H)
        row  H + in_dim + 1          -> b1  (1, H)
        row  H + in_dim + 2          -> b2  (1, H)
        row  H + in_dim + 3          -> b3 broadcast across the row (1, H)
    """
    H = slab_ref.shape[1]
    base = H
    x = x_ref[...]                                       # (B, in_dim)  f32

    # Static slices into the packed parameter slab.
    w2 = slab_ref[0:H, :]                                # (H, H) aligned tile
    w3_row = slab_ref[base + in_dim:base + in_dim + 1, :]        # (1, H)
    b1 = slab_ref[base + in_dim + 1:base + in_dim + 2, :]        # (1, H)
    b2 = slab_ref[base + in_dim + 2:base + in_dim + 3, :]        # (1, H)
    b3 = slab_ref[base + in_dim + 3:base + in_dim + 4, :]        # (1, H), all == b3

    # ---- Layer 1: K = in_dim (tiny) -> VPU broadcast-FMAs, no MXU pass. ----
    h1 = x[:, 0:1] * slab_ref[base:base + 1, :]          # (B,1)*(1,H) -> (B,H)
    for k in range(1, in_dim):
        h1 = h1 + x[:, k:k + 1] * slab_ref[base + k:base + k + 1, :]
    h1 = jnp.maximum(h1 + b1, 0.0)                       # (B, H)  f32

    # ---- Layer 2: the only real matmul -> MXU, f32 operands + f32 acc. -----
    # (keep f32 at small batch for parity; bf16 only for a large-batch path)
    h2 = jnp.dot(h1, w2, preferred_element_type=jnp.float32)
    h2 = jnp.maximum(h2 + b2, 0.0)                       # (B, H)  f32

    # ---- Layer 3: N = 1 -> VPU multiply + cross-lane (XLU) reduction. ------
    v = jnp.sum(h2 * w3_row, axis=-1, keepdims=True) + b3[:, 0:1]
    out_ref[...] = v.astype(out_ref.dtype)               # (B, 1)


@jax.jit
def critic_forward(x, slab):
    """x: (B, in_dim) f32; slab: packed params from pack_critic_params."""
    batch, in_dim = x.shape
    H = slab.shape[1]
    kernel = functools.partial(critic_kernel, in_dim=in_dim)

    flops = 2 * batch * (in_dim * H + H * H + H)
    bytes_accessed = 4 * (x.size + slab.size + batch)    # f32 everywhere

    return pl.pallas_call(
        kernel,
        out_shape=jax.ShapeDtypeStruct((batch, 1), jnp.float32),
        in_specs=[
            pl.BlockSpec(memory_space=pltpu.MemorySpace.VMEM),   # x    (B, in_dim)
            pl.BlockSpec(memory_space=pltpu.MemorySpace.VMEM),   # slab (H+in_dim+4, H)
        ],
        out_specs=pl.BlockSpec(memory_space=pltpu.MemorySpace.VMEM),
        cost_estimate=pl.CostEstimate(
            flops=flops, transcendentals=0, bytes_accessed=bytes_accessed),
    )(x, slab)


def pack_critic_params(w1, b1, w2, b2, w3, b3):
    """Pack ALL parameters into one contiguous f32 slab (do this once).

    Returns slab: (H + in_dim + 4, H) f32
        rows = [w2 ; w1 ; w3^T ; b1 ; b2 ; broadcast(b3)]
    """
    in_dim, H = w1.shape
    b3_row = jnp.broadcast_to(jnp.asarray(b3, jnp.float32).reshape(1, 1), (1, H))
    slab = jnp.concatenate(
        [w2, w1, w3.T, b1, b2, b3_row], axis=0).astype(jnp.float32)
    return slab


def init_critic_params(key, in_dim: int, hidden_dim: int = 128):
    """Deterministic init mirroring the PyTorch module's __init__.

    layer1/layer2: PyTorch default Linear init, U(-1/sqrt(fan_in), 1/sqrt(fan_in)).
    out:           initialize_uniformly -> U(-0.003, 0.003).
    Weights are produced directly in (in, out) layout (y = x @ W + b).
    """
    k1w, k1b, k2w, k2b, k3w, k3b = jax.random.split(key, 6)

    bound1 = 1.0 / jnp.sqrt(in_dim)
    w1 = jax.random.uniform(k1w, (in_dim, hidden_dim), jnp.float32,
                            -bound1, bound1)
    b1 = jax.random.uniform(k1b, (1, hidden_dim), jnp.float32,
                            -bound1, bound1)

    bound2 = 1.0 / jnp.sqrt(hidden_dim)
    w2 = jax.random.uniform(k2w, (hidden_dim, hidden_dim), jnp.float32,
                            -bound2, bound2)
    b2 = jax.random.uniform(k2b, (1, hidden_dim), jnp.float32,
                            -bound2, bound2)

    init_w = 0.003
    w3 = jax.random.uniform(k3w, (hidden_dim, 1), jnp.float32,
                            -init_w, init_w)
    b3 = jax.random.uniform(k3b, (1, 1), jnp.float32, -init_w, init_w)

    return w1, b1, w2, b2, w3, b3


if __name__ == "__main__":
    key = jax.random.PRNGKey(0)
    k_x, k_p = jax.random.split(key)

    batch = 8
    in_dim = 3          # Pendulum-v1 observation dim
    hidden_dim = 128

    state = jax.random.normal(k_x, (batch, in_dim), jnp.float32)
    w1, b1, w2, b2, w3, b3 = init_critic_params(k_p, in_dim, hidden_dim)
    slab = pack_critic_params(w1, b1, w2, b2, w3, b3)

    value = critic_forward(state, slab)
    value = jax.block_until_ready(value)

    # Pure-JAX f32 reference.  All kernel math is f32 (MXU f32 accumulation),
    # so the comparison can be tight.
    ref = jnp.maximum(state @ w1 + b1, 0.0)
    ref = jnp.maximum(ref @ w2 + b2, 0.0)
    ref = ref @ w3 + b3

    assert value.shape == (batch, 1)
    assert jnp.allclose(value, ref, atol=1e-3, rtol=1e-3), (value, ref)

    print("KERNEL_OK")
</pallas_src>

<mosaic_0001>
module attributes {stable_mosaic.version = 11 : i64} {
  func.func @critic_kernel(%arg0: memref<8x3xf32, #tpu.memory_space<vmem>>, %arg1: memref<135x128xf32, #tpu.memory_space<vmem>>, %arg2: memref<8x1xf32, #tpu.memory_space<vmem>>) attributes {dimension_semantics = [], scalar_prefetch = 0 : i64, scratch_operands = 0 : i64, tpu.core_type = #tpu.core_type<tc>} {
    %c0 = arith.constant 0 : index
    %c0_0 = arith.constant 0 : index
    %0 = vector.load %arg0[%c0, %c0_0] : memref<8x3xf32, #tpu.memory_space<vmem>>, vector<8x3xf32>
    %c0_1 = arith.constant 0 : index
    %c0_2 = arith.constant 0 : index
    %1 = vector.load %arg1[%c0_1, %c0_2] : memref<135x128xf32, #tpu.memory_space<vmem>>, vector<128x128xf32>
    %c131 = arith.constant 131 : index
    %c0_3 = arith.constant 0 : index
    %2 = vector.load %arg1[%c131, %c0_3] : memref<135x128xf32, #tpu.memory_space<vmem>>, vector<1x128xf32>
    %c132 = arith.constant 132 : index
    %c0_4 = arith.constant 0 : index
    %3 = vector.load %arg1[%c132, %c0_4] : memref<135x128xf32, #tpu.memory_space<vmem>>, vector<1x128xf32>
    %c133 = arith.constant 133 : index
    %c0_5 = arith.constant 0 : index
    %4 = vector.load %arg1[%c133, %c0_5] : memref<135x128xf32, #tpu.memory_space<vmem>>, vector<1x128xf32>
    %c134 = arith.constant 134 : index
    %c0_6 = arith.constant 0 : index
    %5 = vector.load %arg1[%c134, %c0_6] : memref<135x128xf32, #tpu.memory_space<vmem>>, vector<1x128xf32>
    %6 = vector.extract_strided_slice %0 {offsets = [0, 0], sizes = [8, 1], strides = [1, 1]} : vector<8x3xf32> to vector<8x1xf32>
    %c128 = arith.constant 128 : index
    %c0_7 = arith.constant 0 : index
    %7 = vector.load %arg1[%c128, %c0_7] : memref<135x128xf32, #tpu.memory_space<vmem>>, vector<1x128xf32>
    %8 = vector.broadcast %6 : vector<8x1xf32> to vector<8x128xf32>
    %9 = vector.broadcast %7 : vector<1x128xf32> to vector<8x128xf32>
    %10 = arith.mulf %8, %9 : vector<8x128xf32>
    %11 = vector.extract_strided_slice %0 {offsets = [0, 1], sizes = [8, 1], strides = [1, 1]} : vector<8x3xf32> to vector<8x1xf32>
    %c129 = arith.constant 129 : index
    %c0_8 = arith.constant 0 : index
    %12 = vector.load %arg1[%c129, %c0_8] : memref<135x128xf32, #tpu.memory_space<vmem>>, vector<1x128xf32>
    %13 = vector.broadcast %11 : vector<8x1xf32> to vector<8x128xf32>
    %14 = vector.broadcast %12 : vector<1x128xf32> to vector<8x128xf32>
    %15 = arith.mulf %13, %14 : vector<8x128xf32>
    %16 = arith.addf %10, %15 : vector<8x128xf32>
    %17 = vector.extract_strided_slice %0 {offsets = [0, 2], sizes = [8, 1], strides = [1, 1]} : vector<8x3xf32> to vector<8x1xf32>
    %c130 = arith.constant 130 : index
    %c0_9 = arith.constant 0 : index
    %18 = vector.load %arg1[%c130, %c0_9] : memref<135x128xf32, #tpu.memory_space<vmem>>, vector<1x128xf32>
    %19 = vector.broadcast %17 : vector<8x1xf32> to vector<8x128xf32>
    %20 = vector.broadcast %18 : vector<1x128xf32> to vector<8x128xf32>
    %21 = arith.mulf %19, %20 : vector<8x128xf32>
    %22 = arith.addf %16, %21 : vector<8x128xf32>
    %23 = vector.broadcast %3 : vector<1x128xf32> to vector<8x128xf32>
    %24 = arith.addf %22, %23 : vector<8x128xf32>
    %cst = arith.constant 0.000000e+00 : f32
    %25 = vector.broadcast %cst : f32 to vector<8x128xf32>
    %26 = arith.maximumf %24, %25 : vector<8x128xf32>
    %cst_10 = arith.constant dense<0.000000e+00> : vector<8x128xf32>
    %27 = tpu.matmul %26, %1, %cst_10 {dimension_numbers = #tpu.dot_dimension_numbers<[1], [0], [0], [1], [0, 0, 1, 1], [], []>} : vector<8x128xf32>, vector<128x128xf32>, vector<8x128xf32> -> vector<8x128xf32>
    %28 = vector.broadcast %4 : vector<1x128xf32> to vector<8x128xf32>
    %29 = arith.addf %27, %28 : vector<8x128xf32>
    %cst_11 = arith.constant 0.000000e+00 : f32
    %30 = vector.broadcast %cst_11 : f32 to vector<8x128xf32>
    %31 = arith.maximumf %29, %30 : vector<8x128xf32>
    %32 = vector.broadcast %2 : vector<1x128xf32> to vector<8x128xf32>
    %33 = arith.mulf %31, %32 : vector<8x128xf32>
    %cst_12 = arith.constant dense<0.000000e+00> : vector<8xf32>
    %34 = vector.multi_reduction <add>, %33, %cst_12 [1] : vector<8x128xf32> to vector<8xf32>
    %35 = vector.shape_cast %34 : vector<8xf32> to vector<8x1xf32>
    %36 = vector.extract_strided_slice %5 {offsets = [0, 0], sizes = [1, 1], strides = [1, 1]} : vector<1x128xf32> to vector<1x1xf32>
    %37 = vector.broadcast %36 : vector<1x1xf32> to vector<8x1xf32>
    %38 = arith.addf %35, %37 : vector<8x1xf32>
    %c0_13 = arith.constant 0 : index
    %c0_14 = arith.constant 0 : index
    %39 = vector.load %arg2[%c0_13, %c0_14] : memref<8x1xf32, #tpu.memory_space<vmem>>, vector<8x1xf32>
    tpu.vector_store %arg2[%c0_13, %c0_14], %38 {strides = array<i32>} : memref<8x1xf32, #tpu.memory_space<vmem>>, vector<8x1xf32>,
    return
  }
}

</mosaic_0001>

<llo_original>
// kernel: critic_forward.1
$region0: #{critic_forward.1}
  #allocation0 [shape = 'u32[]', space=smem, size = 0x4, offset = 0x4, fixed_abs, tag = 'smem constant byte address 0x4 - core index']
  #allocation1 [shape = 'u32[72,128]{1,0:T(1,128)}', space=vmem, size = 0x9000, scoped, tag = 'internal scratch']
  %s0 = inlined_call_operand.vmem [shape: f32[8,3], index: 0, kind: input, shape index: {}]
  %s1 = inlined_call_operand.hbm [shape: f32[135,128], index: 1, kind: input, shape index: {}]
  %s2 = inlined_call_operand.vmem [shape: f32[8,1], index: 2, kind: output, shape index: {}]
  %s3 = sld [smem:[#allocation0]]
  $region22: #{critic_forward.1} parent=0
    _
  %s5 = ssub.s32 1, %s3
  %s6 = scalar_select 0, %s5, %s3
  $region1: #{critic_forward.1} parent=0
    #allocation2 [shape = 'u8[69632]{0}', space=vmem, size = 0x11000, scoped, tag = 'input window, operand 1, single buffered']
    #allocation3 [shape = 's32[1]{0}', space=sflag, size = 0x4, scoped, tag = 'scoped memory for critic_forward.1']
    %7 = vsyncpa [#allocation3], 0
    // Predicated region
    $region2: #{critic_forward.1} parent=1 // pred_check
      _
    $region3: #{critic_forward.1} parent=1 // pred_check_branch
      %9 = sbr.rel (0) target = $region5
    $region4: #{critic_forward.1} parent=1 // pred_region
      _
    $region5: #{critic_forward.1} parent=1 // pred_fallthru
      _
    // Predicated region
    $region6: #{critic_forward.1} parent=1 // pred_check
      _
    $region7: #{critic_forward.1} parent=1 // pred_check_branch
      %11 = sbr.rel (0) target = $region9
    $region8: #{critic_forward.1} parent=1 // pred_region
      %13 = vsyncadd [#allocation3], 0
      %s14 = sshll.u32 %s1, 4
      %s15 = int_to_ptr.hbm [resolvable:$true] %s14
      %s16 = sshll.u32 [#allocation2], 4
      %s17 = int_to_ptr.vmem [resolvable:$true] %s16
      %22 = dma.hbm_to_vmem [thread:$0]  %s15, 2176, %s17, [#allocation3], 128, 128, 8
    $region9: #{critic_forward.1} parent=1 // pred_fallthru
      _
    // Predicated region
    $region10: #{critic_forward.1} parent=1 // pred_check
      _
    $region11: #{critic_forward.1} parent=1 // pred_check_branch
      %24 = sbr.rel (0) target = $region13
    $region12: #{critic_forward.1} parent=1 // pred_region
      %26 = dma.done [#allocation3], 2176
    $region13: #{critic_forward.1} parent=1 // pred_fallthru
      _
    %v27 = vld [vmem:[%s0] sm:$0xff]
    %v28 = vld [vmem:[#allocation2] sm:$0xff]
    %v29 = vld [vmem:[#allocation2 + $0x8] sm:$0xff]
    %v30 = vld [vmem:[#allocation2 + $0x10] sm:$0xff]
    %v31 = vld [vmem:[#allocation2 + $0x18] sm:$0xff]
    %v32 = vld [vmem:[#allocation2 + $0x20] sm:$0xff]
    %v33 = vld [vmem:[#allocation2 + $0x28] sm:$0xff]
    %v34 = vld [vmem:[#allocation2 + $0x30] sm:$0xff]
    %v35 = vld [vmem:[#allocation2 + $0x38] sm:$0xff]
    %v36 = vld [vmem:[#allocation2 + $0x40] sm:$0xff]
    %v37 = vld [vmem:[#allocation2 + $0x48] sm:$0xff]
    %v38 = vld [vmem:[#allocation2 + $0x50] sm:$0xff]
    %v39 = vld [vmem:[#allocation2 + $0x58] sm:$0xff]
    %v40 = vld [vmem:[#allocation2 + $0x60] sm:$0xff]
    %v41 = vld [vmem:[#allocation2 + $0x68] sm:$0xff]
    %v42 = vld [vmem:[#allocation2 + $0x70] sm:$0xff]
    %v43 = vld [vmem:[#allocation2 + $0x78] sm:$0xff]
    %v44 = vld [vmem:[#allocation2 + $0x83] sm:$0x1]
    %v45 = vld [vmem:[#allocation2 + $0x84] sm:$0x1]
    %v46 = vld [vmem:[#allocation2 + $0x85] sm:$0x1]
    %v47 = vld [vmem:[#allocation2 + $0x86] sm:$0x1]
    %v48 = vld [vmem:[#allocation2 + $0x80] sm:$0x1]
    %50 = vset.pattern.permute.xlu0 0
    %51 = vperm.xlu0 %50, %v27
    %v52 = vpop.permute.xlu0 %51
    %v54 = vperm.slane %v48, 0
    %v55 = vmul.f32 %v52, %v54
    %v56 = vld [vmem:[#allocation2 + $0x81] sm:$0x1]
    %57 = vset.pattern.permute.xlu0 1
    %58 = vperm.xlu0 %57, %v27
    %v59 = vpop.permute.xlu0 %58
    %v61 = vperm.slane %v56, 0
    %v62 = vmul.f32 %v59, %v61
    %v63 = vadd.f32 %v55, %v62
    %v64 = vld [vmem:[#allocation2 + $0x82] sm:$0x1]
    %65 = vset.pattern.permute.xlu0 2
    %66 = vperm.xlu0 %65, %v27
    %v67 = vpop.permute.xlu0 %66
    %v69 = vperm.slane %v64, 0
    %v70 = vmul.f32 %v67, %v69
    %v71 = vadd.f32 %v63, %v70
    %v72 = vperm.slane %v45, 0
    %v73 = vadd.f32 %v71, %v72
    %v74 = vmax.f32 %v73, 0.0
    %v75 = vperm.slane %v46, 0
    %76 = vmatpush.msra.mxu0 %v43
    %77 = vmatpush.msra.mxu0 %v42
    %78 = vmatpush.msra.mxu0 %v41
    %79 = vmatpush.msra.mxu0 %v40
    %80 = vmatpush.msra.mxu0 %v39
    %81 = vmatpush.msra.mxu0 %v38
    %82 = vmatpush.msra.mxu0 %v37
    %83 = vmatpush.msra.mxu0 %v36
    %84 = vmatpush.msra.mxu0 %v35
    %85 = vmatpush.msra.mxu0 %v34
    %86 = vmatpush.msra.mxu0 %v33
    %87 = vmatpush.msra.mxu0 %v32
    %88 = vmatpush.msra.mxu0 %v31
    %89 = vmatpush.msra.mxu0 %v30
    %90 = vmatpush.msra.mxu0 %v29
    %91 = vmatpush.msra.mxu0 %v28
    %92 = vmatmul.f32.gmra.mxu0 %v74
    %v93 = vpop.f32.mrf.mxu0
    %v94 = vadd.f32 %v75, %v93
    %95 = vdwg.mxu0
    %v96 = vmax.f32 %v94, 0.0
    %v97 = vperm.slane %v44, 0
    %v98 = vmul.f32 %v96, %v97
    %99 = vadd.xlane.f32.xlu0 %v98
    %v100 = vpop.xlane.xlu0 %99
    %v101 = vperm.slane %v47, 0
    %v102 = vadd.f32 %v100, %v101
    %vm103 = vcmask 7168
    %104 = vst.msk [vmem:[%s2] sm:$0xff] %vm103, %v102
    // Predicated region
    $region14: #{critic_forward.1} parent=1 // pred_check
      _
    $region15: #{critic_forward.1} parent=1 // pred_check_branch
      %106 = sbr.rel (0) target = $region17
    $region16: #{critic_forward.1} parent=1 // pred_region
      _
    $region17: #{critic_forward.1} parent=1 // pred_fallthru
      _
    // Predicated region
    $region18: #{critic_forward.1} parent=1 // pred_check
      _
    $region19: #{critic_forward.1} parent=1 // pred_check_branch
      %108 = sbr.rel (0) target = $region21
    $region20: #{critic_forward.1} parent=1 // pred_region
      _
    $region21: #{critic_forward.1} parent=1 // pred_fallthru
      _
    %109 = vsyncpa [#allocation3], 1

</llo_original>
